<compile_context>
chip_gen: v7x
topology: tpu7x:2x2x1
jax: 0.10.0
libtpu: 0.0.40
codegen_flags: <defaults>
</compile_context>

<pallas_src>
import functools

import jax
import jax.numpy as jnp
from jax.experimental import pallas as pl
from jax.experimental.pallas import tpu as pltpu


def _round_up(n, m):
    return ((n + m - 1) // m) * m


def _nrf_kernel(x_ref, lg_ref, w_ref, wlast_ref, b_ref, o_ref, *, n_trees):
    T = n_trees
    x = x_ref[...]                      # [TB, H]  float32
    lg = lg_ref[...]                    # [TB, 1]  float32 (the appended logit feature)

    # Single fused MXU matmul for all decision + leaf linears of all trees,
    # with the logit feature added as a broadcast (rank-1) VPU update.
    z = jnp.dot(x, w_ref[...], preferred_element_type=jnp.float32)   # [TB, 12T]
    z = z + lg * wlast_ref[...] + b_ref[...]

    dec = jax.nn.sigmoid(z[:, : 4 * T])   # [TB, 4T]  decision-node activations
    leaf = z[:, 4 * T:]                   # [TB, 8T]  leaf linear outputs

    # Node-major packing -> full [TB, T] slabs (vectorized over trees).
    d1 = dec[:, 0 * T:1 * T]
    d2 = dec[:, 1 * T:2 * T]
    d3 = dec[:, 2 * T:3 * T]
    d4 = dec[:, 3 * T:4 * T]
    l = [leaf[:, j * T:(j + 1) * T] for j in range(8)]

    nd1 = 1.0 - d1
    nd2 = 1.0 - d2
    nd3 = 1.0 - d3
    nd4 = 1.0 - d4

    a = d1 * d2      # shared sub-products
    b = d1 * nd2
    c = nd1 * d2
    e = nd1 * nd2

    tree = (
        (a * d4) * l[0] + (a * nd4) * l[1]
        + (b * d3) * l[2] + (b * nd3) * l[3]
        + (c * d4) * l[4] + (c * nd4) * l[5]
        + (e * d3) * l[6] + (e * nd3) * l[7]
    )                                               # [TB, T]  per-tree soft output

    sig = jax.nn.sigmoid(tree)                      # [TB, T]
    # Mean over trees (tiny XLU lane reduce); output is [TB, 1].
    o_ref[...] = jnp.sum(sig, axis=-1, keepdims=True) * (1.0 / T)


def neural_random_forest(x, logits, w_top, w_last, bias, *, batch_tile=1024):
    """x: [B, H], logits: [B]. Packed params from `pack_params`. Returns [B, 1]."""
    x = x.astype(jnp.float32)
    logits = logits.astype(jnp.float32).reshape(-1, 1)      # [B, 1]
    B, H = x.shape
    n_trees = w_top.shape[1] // 12

    # Batch tile: multiple of 8 sublanes; pad B up to a multiple of the tile.
    TB = min(batch_tile, _round_up(B, 8))
    B_pad = _round_up(B, TB)
    if B_pad != B:
        x = jnp.pad(x, ((0, B_pad - B), (0, 0)))
        logits = jnp.pad(logits, ((0, B_pad - B), (0, 0)))

    kernel = functools.partial(_nrf_kernel, n_trees=n_trees)
    out = pl.pallas_call(
        kernel,
        out_shape=jax.ShapeDtypeStruct((B_pad, 1), jnp.float32),
        grid=(B_pad // TB,),
        in_specs=[
            pl.BlockSpec((TB, H), lambda i: (i, 0)),                  # x tile (streamed)
            pl.BlockSpec((TB, 1), lambda i: (i, 0)),                  # logits tile
            pl.BlockSpec((H, 12 * n_trees), lambda i: (0, 0)),        # fused weights (resident)
            pl.BlockSpec((1, 12 * n_trees), lambda i: (0, 0)),        # logit-feature row
            pl.BlockSpec((1, 12 * n_trees), lambda i: (0, 0)),        # fused biases
        ],
        out_specs=pl.BlockSpec((TB, 1), lambda i: (i, 0)),
        compiler_params=pltpu.CompilerParams(
            dimension_semantics=("parallel",)),
    )(x, logits, w_top, w_last, bias)
    return out[:B]


def init_params(key, n_trees, input_dim):
    """PyTorch nn.Linear default init: U(-1/sqrt(in), 1/sqrt(in)) for weight and bias.

    Returned unpacked (per-tree, per-node) so the reference can mirror PyTorch exactly:
      wd: [T, 4, D], bd: [T, 4], wl: [T, 8, D], bl: [T, 8]
    """
    bound = 1.0 / jnp.sqrt(jnp.float32(input_dim))
    k1, k2, k3, k4 = jax.random.split(key, 4)
    wd = jax.random.uniform(k1, (n_trees, 4, input_dim), jnp.float32, -bound, bound)
    bd = jax.random.uniform(k2, (n_trees, 4), jnp.float32, -bound, bound)
    wl = jax.random.uniform(k3, (n_trees, 8, input_dim), jnp.float32, -bound, bound)
    bl = jax.random.uniform(k4, (n_trees, 8), jnp.float32, -bound, bound)
    return wd, bd, wl, bl


def pack_params(wd, bd, wl, bl):
    """Node-major packing for the kernel.

    Columns of the fused matrix:  [node0 over trees | node1 | node2 | node3 |
                                   leaf0 over trees | ... | leaf7]
    Returns (w_top [H, 12T], w_last [1, 12T], bias [1, 12T]) where w_last is the row
    that multiplies the appended-logit feature (last input feature of each Linear).
    """
    T, _, D = wd.shape
    wd_cols = jnp.transpose(wd, (1, 0, 2)).reshape(4 * T, D).T    # [D, 4T], col = node*T + tree
    wl_cols = jnp.transpose(wl, (1, 0, 2)).reshape(8 * T, D).T    # [D, 8T], col = leaf*T + tree
    W = jnp.concatenate([wd_cols, wl_cols], axis=1)               # [D, 12T]
    b = jnp.concatenate(
        [bd.T.reshape(1, 4 * T), bl.T.reshape(1, 8 * T)], axis=1  # [1, 12T]
    )
    return W[:-1], W[-1:], b


def _reference(x, logits, wd, bd, wl, bl):
    """Pure-JAX reference mirroring the PyTorch forward exactly (per-tree params)."""
    xc = jnp.concatenate([x, logits[:, None]], axis=-1)           # [B, D]
    T = wd.shape[0]
    outs = []
    for t in range(T):
        d1, d2, d3, d4 = (jax.nn.sigmoid(xc @ wd[t, k] + bd[t, k]) for k in range(4))
        l = [xc @ wl[t, j] + bl[t, j] for j in range(8)]
        w = [d1 * d2 * d4, d1 * d2 * (1 - d4),
             d1 * (1 - d2) * d3, d1 * (1 - d2) * (1 - d3),
             (1 - d1) * d2 * d4, (1 - d1) * d2 * (1 - d4),
             (1 - d1) * (1 - d2) * d3, (1 - d1) * (1 - d2) * (1 - d3)]
        outs.append(jax.nn.sigmoid(sum(wi * li for wi, li in zip(w, l))))
    return jnp.mean(jnp.stack(outs, axis=0), axis=0)[:, None]     # [B, 1]


if __name__ == "__main__":
    # config = {'hidden_units': 31, 'n_trees': 4}  -> input_dim per tree = 32
    hidden_units = 31
    n_trees = 4
    batch = 8
    input_dim = hidden_units + 1

    key = jax.random.PRNGKey(0)
    k_x, k_logits, k_params = jax.random.split(key, 3)
    x = jax.random.normal(k_x, (batch, hidden_units), jnp.float32)
    logits = jax.random.normal(k_logits, (batch,), jnp.float32)

    wd, bd, wl, bl = init_params(k_params, n_trees, input_dim)
    w_top, w_last, bias = pack_params(wd, bd, wl, bl)

    out = neural_random_forest(x, logits, w_top, w_last, bias)
    out = jax.block_until_ready(out)

    ref = _reference(x, logits, wd, bd, wl, bl)
    assert out.shape == (batch, 1), out.shape
    assert jnp.allclose(out, ref, atol=1e-5, rtol=1e-5), (out, ref)
    print("KERNEL_OK")
</pallas_src>

<mosaic_0001>
module attributes {stable_mosaic.version = 11 : i64} {
  func.func @_nrf_kernel(%arg0: i32, %arg1: memref<8x31xf32, #tpu.memory_space<vmem>>, %arg2: memref<8x1xf32, #tpu.memory_space<vmem>>, %arg3: memref<31x48xf32, #tpu.memory_space<vmem>>, %arg4: memref<1x48xf32, #tpu.memory_space<vmem>>, %arg5: memref<1x48xf32, #tpu.memory_space<vmem>>, %arg6: memref<8x1xf32, #tpu.memory_space<vmem>>) attributes {dimension_semantics = [#tpu.dimension_semantics<parallel>], iteration_bounds = array<i64: 1>, scalar_prefetch = 0 : i64, scratch_operands = 0 : i64, tpu.core_type = #tpu.core_type<tc>, window_params = [{transform_indices = @transform_0, window_bounds = array<i64: 8, 31>}, {transform_indices = @transform_1, window_bounds = array<i64: 8, 1>}, {pipeline_mode = #tpu.pipeline_mode<synchronous>, transform_indices = @transform_2, window_bounds = array<i64: 31, 48>}, {pipeline_mode = #tpu.pipeline_mode<synchronous>, transform_indices = @transform_3, window_bounds = array<i64: 1, 48>}, {pipeline_mode = #tpu.pipeline_mode<synchronous>, transform_indices = @transform_4, window_bounds = array<i64: 1, 48>}, {transform_indices = @transform_5, window_bounds = array<i64: 8, 1>}]} {
    %c0 = arith.constant 0 : index
    %c0_0 = arith.constant 0 : index
    %0 = vector.load %arg1[%c0, %c0_0] : memref<8x31xf32, #tpu.memory_space<vmem>>, vector<8x31xf32>
    %c0_1 = arith.constant 0 : index
    %c0_2 = arith.constant 0 : index
    %1 = vector.load %arg2[%c0_1, %c0_2] : memref<8x1xf32, #tpu.memory_space<vmem>>, vector<8x1xf32>
    %c0_3 = arith.constant 0 : index
    %c0_4 = arith.constant 0 : index
    %2 = vector.load %arg3[%c0_3, %c0_4] : memref<31x48xf32, #tpu.memory_space<vmem>>, vector<31x48xf32>
    %cst = arith.constant dense<0.000000e+00> : vector<8x48xf32>
    %3 = tpu.matmul %0, %2, %cst {dimension_numbers = #tpu.dot_dimension_numbers<[1], [0], [0], [1], [0, 0, 1, 1], [], []>} : vector<8x31xf32>, vector<31x48xf32>, vector<8x48xf32> -> vector<8x48xf32>
    %c0_5 = arith.constant 0 : index
    %c0_6 = arith.constant 0 : index
    %4 = vector.load %arg4[%c0_5, %c0_6] : memref<1x48xf32, #tpu.memory_space<vmem>>, vector<1x48xf32>
    %5 = vector.broadcast %1 : vector<8x1xf32> to vector<8x48xf32>
    %6 = vector.broadcast %4 : vector<1x48xf32> to vector<8x48xf32>
    %7 = arith.mulf %5, %6 : vector<8x48xf32>
    %8 = arith.addf %3, %7 : vector<8x48xf32>
    %c0_7 = arith.constant 0 : index
    %c0_8 = arith.constant 0 : index
    %9 = vector.load %arg5[%c0_7, %c0_8] : memref<1x48xf32, #tpu.memory_space<vmem>>, vector<1x48xf32>
    %10 = vector.broadcast %9 : vector<1x48xf32> to vector<8x48xf32>
    %11 = arith.addf %8, %10 : vector<8x48xf32>
    %12 = vector.extract_strided_slice %11 {offsets = [0, 0], sizes = [8, 16], strides = [1, 1]} : vector<8x48xf32> to vector<8x16xf32>
    %13 = arith.negf %12 : vector<8x16xf32>
    %14 = math.exp %13 : vector<8x16xf32>
    %cst_9 = arith.constant 1.000000e+00 : f32
    %15 = vector.broadcast %cst_9 : f32 to vector<8x16xf32>
    %16 = arith.addf %15, %14 : vector<8x16xf32>
    %17 = arith.divf %15, %16 : vector<8x16xf32>
    %18 = vector.extract_strided_slice %11 {offsets = [0, 16], sizes = [8, 32], strides = [1, 1]} : vector<8x48xf32> to vector<8x32xf32>
    %19 = vector.extract_strided_slice %17 {offsets = [0, 0], sizes = [8, 4], strides = [1, 1]} : vector<8x16xf32> to vector<8x4xf32>
    %20 = vector.extract_strided_slice %17 {offsets = [0, 4], sizes = [8, 4], strides = [1, 1]} : vector<8x16xf32> to vector<8x4xf32>
    %21 = vector.extract_strided_slice %17 {offsets = [0, 8], sizes = [8, 4], strides = [1, 1]} : vector<8x16xf32> to vector<8x4xf32>
    %22 = vector.extract_strided_slice %17 {offsets = [0, 12], sizes = [8, 4], strides = [1, 1]} : vector<8x16xf32> to vector<8x4xf32>
    %23 = vector.extract_strided_slice %18 {offsets = [0, 0], sizes = [8, 4], strides = [1, 1]} : vector<8x32xf32> to vector<8x4xf32>
    %24 = vector.extract_strided_slice %18 {offsets = [0, 4], sizes = [8, 4], strides = [1, 1]} : vector<8x32xf32> to vector<8x4xf32>
    %25 = vector.extract_strided_slice %18 {offsets = [0, 8], sizes = [8, 4], strides = [1, 1]} : vector<8x32xf32> to vector<8x4xf32>
    %26 = vector.extract_strided_slice %18 {offsets = [0, 12], sizes = [8, 4], strides = [1, 1]} : vector<8x32xf32> to vector<8x4xf32>
    %27 = vector.extract_strided_slice %18 {offsets = [0, 16], sizes = [8, 4], strides = [1, 1]} : vector<8x32xf32> to vector<8x4xf32>
    %28 = vector.extract_strided_slice %18 {offsets = [0, 20], sizes = [8, 4], strides = [1, 1]} : vector<8x32xf32> to vector<8x4xf32>
    %29 = vector.extract_strided_slice %18 {offsets = [0, 24], sizes = [8, 4], strides = [1, 1]} : vector<8x32xf32> to vector<8x4xf32>
    %30 = vector.extract_strided_slice %18 {offsets = [0, 28], sizes = [8, 4], strides = [1, 1]} : vector<8x32xf32> to vector<8x4xf32>
    %cst_10 = arith.constant 1.000000e+00 : f32
    %31 = vector.broadcast %cst_10 : f32 to vector<8x4xf32>
    %32 = arith.subf %31, %19 : vector<8x4xf32>
    %cst_11 = arith.constant 1.000000e+00 : f32
    %33 = vector.broadcast %cst_11 : f32 to vector<8x4xf32>
    %34 = arith.subf %33, %20 : vector<8x4xf32>
    %cst_12 = arith.constant 1.000000e+00 : f32
    %35 = vector.broadcast %cst_12 : f32 to vector<8x4xf32>
    %36 = arith.subf %35, %21 : vector<8x4xf32>
    %cst_13 = arith.constant 1.000000e+00 : f32
    %37 = vector.broadcast %cst_13 : f32 to vector<8x4xf32>
    %38 = arith.subf %37, %22 : vector<8x4xf32>
    %39 = arith.mulf %19, %20 : vector<8x4xf32>
    %40 = arith.mulf %19, %34 : vector<8x4xf32>
    %41 = arith.mulf %32, %20 : vector<8x4xf32>
    %42 = arith.mulf %32, %34 : vector<8x4xf32>
    %43 = arith.mulf %39, %22 : vector<8x4xf32>
    %44 = arith.mulf %43, %23 : vector<8x4xf32>
    %45 = arith.mulf %39, %38 : vector<8x4xf32>
    %46 = arith.mulf %45, %24 : vector<8x4xf32>
    %47 = arith.addf %44, %46 : vector<8x4xf32>
    %48 = arith.mulf %40, %21 : vector<8x4xf32>
    %49 = arith.mulf %48, %25 : vector<8x4xf32>
    %50 = arith.addf %47, %49 : vector<8x4xf32>
    %51 = arith.mulf %40, %36 : vector<8x4xf32>
    %52 = arith.mulf %51, %26 : vector<8x4xf32>
    %53 = arith.addf %50, %52 : vector<8x4xf32>
    %54 = arith.mulf %41, %22 : vector<8x4xf32>
    %55 = arith.mulf %54, %27 : vector<8x4xf32>
    %56 = arith.addf %53, %55 : vector<8x4xf32>
    %57 = arith.mulf %41, %38 : vector<8x4xf32>
    %58 = arith.mulf %57, %28 : vector<8x4xf32>
    %59 = arith.addf %56, %58 : vector<8x4xf32>
    %60 = arith.mulf %42, %21 : vector<8x4xf32>
    %61 = arith.mulf %60, %29 : vector<8x4xf32>
    %62 = arith.addf %59, %61 : vector<8x4xf32>
    %63 = arith.mulf %42, %36 : vector<8x4xf32>
    %64 = arith.mulf %63, %30 : vector<8x4xf32>
    %65 = arith.addf %62, %64 : vector<8x4xf32>
    %66 = arith.negf %65 : vector<8x4xf32>
    %67 = math.exp %66 : vector<8x4xf32>
    %cst_14 = arith.constant 1.000000e+00 : f32
    %68 = vector.broadcast %cst_14 : f32 to vector<8x4xf32>
    %69 = arith.addf %68, %67 : vector<8x4xf32>
    %70 = arith.divf %68, %69 : vector<8x4xf32>
    %cst_15 = arith.constant dense<0.000000e+00> : vector<8xf32>
    %71 = vector.multi_reduction <add>, %70, %cst_15 [1] : vector<8x4xf32> to vector<8xf32>
    %72 = vector.shape_cast %71 : vector<8xf32> to vector<8x1xf32>
    %cst_16 = arith.constant 2.500000e-01 : f32
    %73 = vector.broadcast %cst_16 : f32 to vector<8x1xf32>
    %74 = arith.mulf %72, %73 : vector<8x1xf32>
    %c0_17 = arith.constant 0 : index
    %c0_18 = arith.constant 0 : index
    %75 = vector.load %arg6[%c0_17, %c0_18] : memref<8x1xf32, #tpu.memory_space<vmem>>, vector<8x1xf32>
    tpu.vector_store %arg6[%c0_17, %c0_18], %74 {strides = array<i32>} : memref<8x1xf32, #tpu.memory_space<vmem>>, vector<8x1xf32>,
    return
  }
  func.func @transform_0(%arg0: i32) -> (i32, i32) {
    %c0_i32 = arith.constant 0 : i32
    %c0_i32_0 = arith.constant 0 : i32
    return %arg0, %c0_i32 : i32, i32
  }
  func.func @transform_1(%arg0: i32) -> (i32, i32) {
    %c0_i32 = arith.constant 0 : i32
    %c0_i32_0 = arith.constant 0 : i32
    return %arg0, %c0_i32 : i32, i32
  }
  func.func @transform_2(%arg0: i32) -> (i32, i32) {
    %c0_i32 = arith.constant 0 : i32
    %c0_i32_0 = arith.constant 0 : i32
    %c0_i32_1 = arith.constant 0 : i32
    return %c0_i32, %c0_i32_0 : i32, i32
  }
  func.func @transform_3(%arg0: i32) -> (i32, i32) {
    %c0_i32 = arith.constant 0 : i32
    %c0_i32_0 = arith.constant 0 : i32
    %c0_i32_1 = arith.constant 0 : i32
    return %c0_i32, %c0_i32_0 : i32, i32
  }
  func.func @transform_4(%arg0: i32) -> (i32, i32) {
    %c0_i32 = arith.constant 0 : i32
    %c0_i32_0 = arith.constant 0 : i32
    %c0_i32_1 = arith.constant 0 : i32
    return %c0_i32, %c0_i32_0 : i32, i32
  }
  func.func @transform_5(%arg0: i32) -> (i32, i32) {
    %c0_i32 = arith.constant 0 : i32
    %c0_i32_0 = arith.constant 0 : i32
    return %arg0, %c0_i32 : i32, i32
  }
}

</mosaic_0001>

<llo_original>
// kernel: tpu_custom_call.1
$region0: #{tpu_custom_call.1}
  #allocation0 [shape = 'u32[]', space=smem, size = 0x4, offset = 0x4, fixed_abs, tag = 'smem constant byte address 0x4 - core index']
  #allocation1 [shape = 'u32[144,128]{1,0:T(1,128)}', space=vmem, size = 0x12000, scoped, tag = 'internal scratch']
  %s0 = inlined_call_operand.vmem [shape: f32[8,31], index: 0, kind: input, shape index: {}]
  %s1 = inlined_call_operand.vmem [shape: f32[8,1], index: 1, kind: input, shape index: {}]
  %s2 = inlined_call_operand.hbm [shape: f32[31,48], index: 2, kind: input, shape index: {}]
  %s3 = inlined_call_operand.vmem [shape: f32[1,48], index: 3, kind: input, shape index: {}]
  %s4 = inlined_call_operand.vmem [shape: f32[1,48], index: 4, kind: input, shape index: {}]
  %s5 = inlined_call_operand.vmem [shape: f32[8,1], index: 5, kind: output, shape index: {}]
  %s6 = sld [smem:[#allocation0]]
  $region34: #{tpu_custom_call.1} parent=0
    _
  %s8 = ssub.s32 1, %s6
  %s9 = scalar_select 0, %s8, %s6
  $region1: #{tpu_custom_call.1} parent=0
    #allocation2 [shape = 'u8[16384]{0}', space=vmem, size = 0x4000, scoped, tag = 'input window, operand 2, single buffered']
    #allocation3 [shape = 's32[1]{0}', space=sflag, size = 0x4, scoped, tag = 'scoped memory for tpu_custom_call.1']
    %10 = vsyncpa [#allocation3], 0
    // Predicated region
    $region2: #{tpu_custom_call.1} parent=1 // pred_check
      _
    $region3: #{tpu_custom_call.1} parent=1 // pred_check_branch
      %12 = sbr.rel (0) target = $region5
    $region4: #{tpu_custom_call.1} parent=1 // pred_region
      _
    $region5: #{tpu_custom_call.1} parent=1 // pred_fallthru
      _
    // Predicated region
    $region6: #{tpu_custom_call.1} parent=1 // pred_check
      _
    $region7: #{tpu_custom_call.1} parent=1 // pred_check_branch
      %14 = sbr.rel (0) target = $region9
    $region8: #{tpu_custom_call.1} parent=1 // pred_region
      _
    $region9: #{tpu_custom_call.1} parent=1 // pred_fallthru
      _
    // Predicated region
    $region10: #{tpu_custom_call.1} parent=1 // pred_check
      _
    $region11: #{tpu_custom_call.1} parent=1 // pred_check_branch
      %16 = sbr.rel (0) target = $region13
    $region12: #{tpu_custom_call.1} parent=1 // pred_region
      %s18 = ssub.s32 512, 512
      %19 = vsyncadd [#allocation3], %s18
      %s20 = sshll.u32 [#allocation2], 4
      %s21 = int_to_ptr.vmem [resolvable:$true] %s20
      %26 = dma.hbm_to_vmem [thread:$0]  %s2, 512, %s21, [#allocation3], 128, 128, 8
    $region13: #{tpu_custom_call.1} parent=1 // pred_fallthru
      _
    // Predicated region
    $region14: #{tpu_custom_call.1} parent=1 // pred_check
      _
    $region15: #{tpu_custom_call.1} parent=1 // pred_check_branch
      %28 = sbr.rel (0) target = $region17
    $region16: #{tpu_custom_call.1} parent=1 // pred_region
      _
    $region17: #{tpu_custom_call.1} parent=1 // pred_fallthru
      _
    // Predicated region
    $region18: #{tpu_custom_call.1} parent=1 // pred_check
      _
    $region19: #{tpu_custom_call.1} parent=1 // pred_check_branch
      %30 = sbr.rel (0) target = $region21
    $region20: #{tpu_custom_call.1} parent=1 // pred_region
      _
    $region21: #{tpu_custom_call.1} parent=1 // pred_fallthru
      _
    // Predicated region
    $region22: #{tpu_custom_call.1} parent=1 // pred_check
      _
    $region23: #{tpu_custom_call.1} parent=1 // pred_check_branch
      %32 = sbr.rel (0) target = $region25
    $region24: #{tpu_custom_call.1} parent=1 // pred_region
      %33 = dma.done [#allocation3], 512
    $region25: #{tpu_custom_call.1} parent=1 // pred_fallthru
      _
    %v34 = vld [vmem:[%s0] sm:$0xff]
    %v35 = vld [vmem:[%s1] sm:$0xff]
    %v36 = vld [vmem:[#allocation2] sm:$0xff]
    %v37 = vld [vmem:[#allocation2 + $0x8] sm:$0xff]
    %v38 = vld [vmem:[#allocation2 + $0x10] sm:$0xff]
    %v39 = vld [vmem:[#allocation2 + $0x18] sm:$0x7f]
    %v40 = vld [vmem:[%s3] sm:$0x1]
    %42 = vset.pattern.permute.xlu0 0
    %43 = vperm.xlu0 %42, %v35
    %v44 = vpop.permute.xlu0 %43
    %v47 = vlaneseq
    %v48 = vshrl.u32 %v47, 7
    %v49 = vsub.s32 0, %v48
    %v50 = vrot.slane %v40, %v49
    %v52 = vmul.f32 %v44, %v50
    %vm53 = vcmask 252928
    %v55 = vsel %vm53, %v34, 0
    %vm57 = vcmask 1046528
    %v59 = vsel %vm57, %v39, 0
    %61 = vmatprep.subr.mxu0 0.0
    %62 = vmatpush1.msra.mxu0 %v36
    %63 = vmatprep.subr.mxu0 0.0
    %64 = vmatpush1.msra.mxu0 %v37
    %65 = vmatprep.subr.mxu0 0.0
    %66 = vmatpush1.msra.mxu0 %v38
    %67 = vmatprep.subr.mxu0 0.0
    %68 = vmatpush1.msra.mxu0 %v59
    %69 = vmatprep.subr.mxu0 0.0
    %70 = vmatpush1.msra.mxu0 0.0
    %71 = vmatprep.subr.mxu0 0.0
    %72 = vmatpush1.msra.mxu0 0.0
    %73 = vmatprep.subr.mxu0 0.0
    %74 = vmatpush1.msra.mxu0 0.0
    %75 = vmatprep.subr.mxu0 0.0
    %76 = vmatpush1.msra.mxu0 0.0
    %77 = vmatprep.subr.mxu0 0.0
    %78 = vmatpush1.msra.mxu0 0.0
    %79 = vmatprep.subr.mxu0 0.0
    %80 = vmatpush1.msra.mxu0 0.0
    %81 = vmatprep.subr.mxu0 0.0
    %82 = vmatpush1.msra.mxu0 0.0
    %83 = vmatprep.subr.mxu0 0.0
    %84 = vmatpush1.msra.mxu0 0.0
    %85 = vmatprep.subr.mxu0 0.0
    %86 = vmatpush1.msra.mxu0 0.0
    %87 = vmatprep.subr.mxu0 0.0
    %88 = vmatpush1.msra.mxu0 0.0
    %89 = vmatprep.subr.mxu0 0.0
    %90 = vmatpush1.msra.mxu0 0.0
    %91 = vmatprep.subr.mxu0 0.0
    %92 = vmatpush1.msra.mxu0 0.0
    %93 = vmatprep.subr.mxu0 0.0
    %94 = vmatpush1.msra.mxu0 0.0
    %95 = vmatprep.subr.mxu0 0.0
    %96 = vmatpush1.msra.mxu0 0.0
    %97 = vmatprep.subr.mxu0 0.0
    %98 = vmatpush1.msra.mxu0 0.0
    %99 = vmatprep.subr.mxu0 0.0
    %100 = vmatpush1.msra.mxu0 0.0
    %101 = vmatprep.subr.mxu0 0.0
    %102 = vmatpush1.msra.mxu0 0.0
    %103 = vmatprep.subr.mxu0 0.0
    %104 = vmatpush1.msra.mxu0 0.0
    %105 = vmatprep.subr.mxu0 0.0
    %106 = vmatpush1.msra.mxu0 0.0
    %107 = vmatprep.subr.mxu0 0.0
    %108 = vmatpush1.msra.mxu0 0.0
    %109 = vmatprep.subr.mxu0 0.0
    %110 = vmatpush1.msra.mxu0 0.0
    %111 = vmatprep.subr.mxu0 0.0
    %112 = vmatpush1.msra.mxu0 0.0
    %113 = vmatprep.subr.mxu0 0.0
    %114 = vmatpush1.msra.mxu0 0.0
    %115 = vmatprep.subr.mxu0 0.0
    %116 = vmatpush1.msra.mxu0 0.0
    %117 = vmatprep.subr.mxu0 0.0
    %118 = vmatpush1.msra.mxu0 0.0
    %119 = vmatprep.subr.mxu0 0.0
    %120 = vmatpush1.msra.mxu0 0.0
    %121 = vmatprep.subr.mxu0 0.0
    %122 = vmatpush1.msra.mxu0 0.0
    %123 = vmatprep.subr.mxu0 0.0
    %124 = vmatpush1.msra.mxu0 0.0
    %125 = vmatprep.mubr.f32.mxu0 0.0
    %126 = vmatmul.mubr.f32.gmra.mrb[0].mxu0 %v55
    %v127 = vpop.f32.mrb[0].mxu0
    %v128 = vadd.f32 %v52, %v127
    %v129 = vpop.f32.mrb[0].mxu0
    %130 = vdwg.mxu0
    %v131 = vld [vmem:[%s4] sm:$0x1]
    %v133 = vlaneseq
    %v134 = vshrl.u32 %v133, 7
    %v135 = vsub.s32 0, %v134
    %v136 = vrot.slane %v131, %v135
    %v138 = vadd.f32 %v128, %v136
    %v139 = vxor.u32 %v138, 2147483648
    %v140 = vmul.f32 %v139, 1.442695
    %v141 = vpow.pop %v140
    %v142 = vadd.f32 %v141, 1.0
    %v143 = vrcp.pop %v142
    %v144 = vmul.f32 1.0, %v143
    %v145 = vsub.f32 1.0, %v144
    %147 = vrot.lane.b32.xlu0 %v144, 124
    %v148 = vpop.permute.xlu0 %147
    %v150 = vmul.f32 %v144, %v148
    %152 = vrot.lane.b32.xlu0 %v145, 124
    %v153 = vpop.permute.xlu0 %152
    %v155 = vmul.f32 %v144, %v153
    %v156 = vmul.f32 %v145, %v148
    %v157 = vmul.f32 %v145, %v153
    %158 = vrot.lane.b32.xlu0 %v144, 116
    %v159 = vpop.permute.xlu0 %158
    %v161 = vmul.f32 %v150, %v159
    %163 = vrot.lane.b32.xlu0 %v138, 112
    %v164 = vpop.permute.xlu0 %163
    %v166 = vmul.f32 %v161, %v164
    %167 = vrot.lane.b32.xlu0 %v145, 116
    %v168 = vpop.permute.xlu0 %167
    %v170 = vmul.f32 %v150, %v168
    %171 = vrot.lane.b32.xlu0 %v138, 108
    %v172 = vpop.permute.xlu0 %171
    %v174 = vmul.f32 %v170, %v172
    %v175 = vadd.f32 %v166, %v174
    %176 = vrot.lane.b32.xlu0 %v144, 120
    %v177 = vpop.permute.xlu0 %176
    %v179 = vmul.f32 %v155, %v177
    %180 = vrot.lane.b32.xlu0 %v138, 104
    %v181 = vpop.permute.xlu0 %180
    %v183 = vmul.f32 %v179, %v181
    %v184 = vadd.f32 %v175, %v183
    %185 = vrot.lane.b32.xlu0 %v145, 120
    %v186 = vpop.permute.xlu0 %185
    %v188 = vmul.f32 %v155, %v186
    %189 = vrot.lane.b32.xlu0 %v138, 100
    %v190 = vpop.permute.xlu0 %189
    %v192 = vmul.f32 %v188, %v190
    %v193 = vadd.f32 %v184, %v192
    %v194 = vmul.f32 %v156, %v159
    %195 = vrot.lane.b32.xlu0 %v138, 96
    %v196 = vpop.permute.xlu0 %195
    %v198 = vmul.f32 %v194, %v196
    %v199 = vadd.f32 %v193, %v198
    %v200 = vmul.f32 %v156, %v168
    %201 = vrot.lane.b32.xlu0 %v138, 92
    %v202 = vpop.permute.xlu0 %201
    %v204 = vmul.f32 %v200, %v202
    %v205 = vadd.f32 %v199, %v204
    %v206 = vmul.f32 %v157, %v177
    %207 = vrot.lane.b32.xlu0 %v138, 88
    %v208 = vpop.permute.xlu0 %207
    %v210 = vmul.f32 %v206, %v208
    %v211 = vadd.f32 %v205, %v210
    %v212 = vmul.f32 %v157, %v186
    %213 = vrot.lane.b32.xlu0 %v138, 84
    %v214 = vpop.permute.xlu0 %213
    %v216 = vmul.f32 %v212, %v214
    %v217 = vadd.f32 %v211, %v216
    %v218 = vxor.u32 %v217, 2147483648
    %v219 = vmul.f32 %v218, 1.442695
    %v220 = vpow.pop %v219
    %v221 = vadd.f32 %v220, 1.0
    %v222 = vrcp.pop %v221
    %v223 = vmul.f32 1.0, %v222
    %vm224 = vcmask 31744
    %v225 = vsel %vm224, %v223, 0.0
    %226 = vadd.xlane.f32.xlu0 %v225
    %v227 = vpop.xlane.xlu0 %226
    %v228 = vmul.f32 %v227, 0.25
    %vm229 = vcmask 7168
    %230 = vst.msk [vmem:[%s5] sm:$0xff] %vm229, %v228
    // Predicated region
    $region26: #{tpu_custom_call.1} parent=1 // pred_check
      _
    $region27: #{tpu_custom_call.1} parent=1 // pred_check_branch
      %232 = sbr.rel (0) target = $region29
    $region28: #{tpu_custom_call.1} parent=1 // pred_region
      _
    $region29: #{tpu_custom_call.1} parent=1 // pred_fallthru
      _
    // Predicated region
    $region30: #{tpu_custom_call.1} parent=1 // pred_check
      _
    $region31: #{tpu_custom_call.1} parent=1 // pred_check_branch
      %234 = sbr.rel (0) target = $region33
    $region32: #{tpu_custom_call.1} parent=1 // pred_region
      _
    $region33: #{tpu_custom_call.1} parent=1 // pred_fallthru
      _
    %235 = vsyncpa [#allocation3], 1

</llo_original>
